<compile_context>
chip_gen: v7x
topology: tpu7x:2x2x1
jax: 0.10.0
libtpu: 0.0.40
codegen_flags: <defaults>
</compile_context>

<pallas_src>
import jax
import jax.numpy as jnp
from jax.experimental import pallas as pl
from jax.experimental.pallas import tpu as pltpu


# --------------------------------------------------------------------------- #
# Per-generation VMEM budget.
# --------------------------------------------------------------------------- #
def _budget():
    """Returns (bytes per array block, vmem_limit_bytes)."""
    vmem = None
    try:
        vmem = getattr(pltpu.get_tpu_info(), "vmem_capacity_bytes", None)
    except Exception:
        vmem = None
    if vmem is None:
        vmem = 64 << 20
    if vmem >= (100 << 20):              # v5e / v6e: 128 MiB physical VMEM
        return 6 << 20, 56 << 20
    return 4 << 20, 40 << 20             # v7x / unknown: 64 MiB physical VMEM


def _pick_2d_shape(n):
    """Factor n elements into (rows, lanes): lanes a multiple of 128, rows>=8
    when possible, so blocks are fully (8,128)-dense."""
    fallback = (1, n)
    for lanes in (8192, 4096, 2048, 1024, 512, 256, 128):
        if n % lanes == 0:
            rows = n // lanes
            if rows >= 8:
                return rows, lanes
            if fallback == (1, n):
                fallback = (rows, lanes)
    return fallback


def _tiles(R, L, itemsize):
    """Dense (rblk, lblk) block + cdiv grid for a (R, L) array."""
    blk_bytes, vmem_limit = _budget()

    # lane block: multiple of 128 (or the full lane dim)
    lane_cap = max(128, (blk_bytes // (8 * itemsize)) // 128 * 128)
    if L % 128 == 0:
        lblk = min(L, lane_cap)
    elif L <= lane_cap:
        lblk = L                               # full (ragged) lane dim
    else:
        lblk = lane_cap                        # ragged edge block handled by Pallas

    # sublane block: multiple of 8 (or the full row dim)
    row_cap = max(8, blk_bytes // max(1, lblk * itemsize))
    if R < 8:
        rblk = R
    else:
        rblk = max(8, (row_cap // 8) * 8)
        if rblk >= R:
            rblk = R

    grid_r = pl.cdiv(R, rblk)
    grid_l = pl.cdiv(L, lblk)
    # keep at least 2 grid steps when there is work to split (v7x has 2 TCs)
    if grid_r * grid_l == 1 and R > 8:
        rblk = max(8, ((((R + 1) // 2) + 7) // 8) * 8)
        grid_r = pl.cdiv(R, rblk)
    return rblk, lblk, (grid_r, grid_l), vmem_limit


# --------------------------------------------------------------------------- #
# Kernels
# --------------------------------------------------------------------------- #
def _scalar_alpha_kernel(alpha_ref, xs_ref, xt_ref, o_ref):
    a = alpha_ref[0].astype(o_ref.dtype)       # f32 SMEM scalar -> x dtype
    o_ref[...] = a * xs_ref[...] + (1.0 - a) * xt_ref[...]


def _row_alpha_kernel(a_ref, xs_ref, xt_ref, o_ref):
    a = a_ref[...]                              # (rblk, 1), already x dtype
    o_ref[...] = a * xs_ref[...] + (1.0 - a) * xt_ref[...]


# --------------------------------------------------------------------------- #
# 2-D blend wrappers
# --------------------------------------------------------------------------- #
def _blend2d_scalar(xs2, xt2, alpha1):
    R, L = xs2.shape
    rblk, lblk, grid, vmem_limit = _tiles(R, L, xs2.dtype.itemsize)
    return pl.pallas_call(
        _scalar_alpha_kernel,
        out_shape=jax.ShapeDtypeStruct((R, L), xs2.dtype),
        grid_spec=pltpu.PrefetchScalarGridSpec(
            num_scalar_prefetch=1,
            grid=grid,
            in_specs=[
                pl.BlockSpec((rblk, lblk), lambda i, j, a: (i, j)),
                pl.BlockSpec((rblk, lblk), lambda i, j, a: (i, j)),
            ],
            out_specs=pl.BlockSpec((rblk, lblk), lambda i, j, a: (i, j)),
        ),
        compiler_params=pltpu.CompilerParams(
            dimension_semantics=("parallel", "parallel"),
            vmem_limit_bytes=vmem_limit),
    )(alpha1.astype(jnp.float32).reshape(1), xs2, xt2)


def _blend2d_rows(xs2, xt2, alpha_col):
    R, L = xs2.shape
    rblk, lblk, grid, vmem_limit = _tiles(R, L, xs2.dtype.itemsize)
    return pl.pallas_call(
        _row_alpha_kernel,
        out_shape=jax.ShapeDtypeStruct((R, L), xs2.dtype),
        grid=grid,
        in_specs=[
            pl.BlockSpec((rblk, 1), lambda i, j: (i, 0)),
            pl.BlockSpec((rblk, lblk), lambda i, j: (i, j)),
            pl.BlockSpec((rblk, lblk), lambda i, j: (i, j)),
        ],
        out_specs=pl.BlockSpec((rblk, lblk), lambda i, j: (i, j)),
        compiler_params=pltpu.CompilerParams(
            dimension_semantics=("parallel", "parallel"),
            vmem_limit_bytes=vmem_limit),
    )(alpha_col.reshape(R, 1).astype(xs2.dtype), xs2, xt2)


# --------------------------------------------------------------------------- #
# Shape adapters (free, contiguous reshapes only)
# --------------------------------------------------------------------------- #
def _blend_scalar(xs, xt, alpha1):
    shape = xs.shape
    n = int(xs.size)
    R, L = _pick_2d_shape(n)
    out = _blend2d_scalar(xs.reshape(R, L), xt.reshape(R, L), alpha1)
    return out.reshape(shape)


def _blend_rows3d(xs, xt, alpha_rows):
    # learned_with_images, 3-D input (B*T, S, C): alpha per leading row
    r, s, c = xs.shape
    out = _blend2d_rows(xs.reshape(r, s * c), xt.reshape(r, s * c), alpha_rows)
    return out.reshape(r, s, c)


def _blend_frames5d(xs, xt, alpha_bt):
    # learned_with_images, 5-D input (B, C, T, H, W): alpha per (batch, frame)
    b, c, t, h, w = xs.shape
    hw = h * w
    a_rows = jnp.broadcast_to(alpha_bt[:, None, :], (b, c, t)).reshape(b * c * t)
    out = _blend2d_rows(xs.reshape(b * c * t, hw), xt.reshape(b * c * t, hw), a_rows)
    return out.reshape(b, c, t, h, w)


# --------------------------------------------------------------------------- #
# Module-like wrapper, mirroring the PyTorch AlphaBlender semantics
# --------------------------------------------------------------------------- #
class AlphaBlender:
    strategies = ['learned', 'fixed', 'learned_with_images']

    def __init__(self, alpha, merge_strategy='learned_with_images',
                 switch_spatial_to_temporal_mix=False):
        if merge_strategy not in self.strategies:
            raise ValueError(f'merge_strategy needs to be in {self.strategies}')
        self.merge_strategy = merge_strategy
        self.switch_spatial_to_temporal_mix = switch_spatial_to_temporal_mix
        self.mix_factor = jnp.array([float(alpha)], jnp.float32)

    def _alpha(self, image_only_indicator, ndims):
        if self.merge_strategy == 'fixed':
            return self.mix_factor                            # (1,)
        if self.merge_strategy == 'learned':
            return jax.nn.sigmoid(self.mix_factor)            # (1,)
        # learned_with_images
        if image_only_indicator is None:
            raise ValueError('Please provide image_only_indicator to use '
                             'learned_with_images merge strategy')
        if ndims not in (3, 5):
            raise ValueError(f'Unexpected ndims {ndims}. Dimensions should be 3 or 5')
        return jnp.where(image_only_indicator.astype(bool),
                         jnp.float32(1.0),
                         jax.nn.sigmoid(self.mix_factor)[0])  # (B, T)

    def __call__(self, x_spatial, x_temporal, image_only_indicator=None):
        alpha = self._alpha(image_only_indicator, x_spatial.ndim)
        if self.switch_spatial_to_temporal_mix:
            alpha = 1.0 - alpha

        if self.merge_strategy in ('fixed', 'learned'):
            return _blend_scalar(x_spatial, x_temporal, alpha.reshape(1))

        # learned_with_images: alpha has shape (B, T)
        if x_spatial.ndim == 5:
            return _blend_frames5d(x_spatial, x_temporal, alpha)
        return _blend_rows3d(x_spatial, x_temporal, alpha.reshape(-1))


# --------------------------------------------------------------------------- #
if __name__ == "__main__":
    key = jax.random.PRNGKey(0)
    k1, k2, k3, k4, k5 = jax.random.split(key, 5)

    B, C, T, H, W = 2, 4, 8, 16, 16
    xs5 = jax.random.normal(k1, (B, C, T, H, W), jnp.float32)
    xt5 = jax.random.normal(k2, (B, C, T, H, W), jnp.float32)
    indicator = (jax.random.uniform(k3, (B, T)) > 0.5).astype(jnp.float32)

    S, C3 = 8, 32
    xs3 = jax.random.normal(k4, (B * T, S, C3), jnp.float32)
    xt3 = jax.random.normal(k5, (B * T, S, C3), jnp.float32)

    # ---- fixed strategy (scalar alpha), 5-D input ---------------------------
    m = AlphaBlender(0.3, 'fixed')
    y = jax.block_until_ready(m(xs5, xt5))
    ref = 0.3 * xs5 + 0.7 * xt5
    assert y.shape == xs5.shape
    assert jnp.allclose(y, ref, atol=1e-5, rtol=1e-5), "fixed mismatch"

    # ---- learned strategy with switch, 3-D input ----------------------------
    m = AlphaBlender(0.25, 'learned', switch_spatial_to_temporal_mix=True)
    y = jax.block_until_ready(m(xs3, xt3))
    a = 1.0 - jax.nn.sigmoid(jnp.float32(0.25))
    ref = a * xs3 + (1.0 - a) * xt3
    assert jnp.allclose(y, ref, atol=1e-5, rtol=1e-5), "learned mismatch"

    # ---- learned_with_images, 5-D input -------------------------------------
    m = AlphaBlender(0.1, 'learned_with_images')
    y = jax.block_until_ready(m(xs5, xt5, indicator))
    a_bt = jnp.where(indicator.astype(bool), 1.0,
                     jax.nn.sigmoid(m.mix_factor)[0])
    a5 = a_bt[:, None, :, None, None]
    ref = a5 * xs5 + (1.0 - a5) * xt5
    assert y.shape == xs5.shape
    assert jnp.allclose(y, ref, atol=1e-5, rtol=1e-5), "lwi-5d mismatch"

    # ---- learned_with_images, 3-D input -------------------------------------
    y = jax.block_until_ready(m(xs3, xt3, indicator))
    a3 = a_bt.reshape(-1)[:, None, None]
    ref = a3 * xs3 + (1.0 - a3) * xt3
    assert y.shape == xs3.shape
    assert jnp.allclose(y, ref, atol=1e-5, rtol=1e-5), "lwi-3d mismatch"

    print("KERNEL_OK")
</pallas_src>

<mosaic_0001>
module attributes {stable_mosaic.version = 11 : i64} {
  func.func @_scalar_alpha_kernel(%arg0: i32, %arg1: i32, %arg2: memref<1xf32, #tpu.memory_space<smem>>, %arg3: memref<8x2048xf32, #tpu.memory_space<vmem>>, %arg4: memref<8x2048xf32, #tpu.memory_space<vmem>>, %arg5: memref<8x2048xf32, #tpu.memory_space<vmem>>) attributes {dimension_semantics = [#tpu.dimension_semantics<parallel>, #tpu.dimension_semantics<parallel>], iteration_bounds = array<i64: 1, 1>, scalar_prefetch = 1 : i64, scratch_operands = 0 : i64, tpu.core_type = #tpu.core_type<tc>, window_params = [{transform_indices = @transform_0, window_bounds = array<i64: 8, 2048>}, {transform_indices = @transform_1, window_bounds = array<i64: 8, 2048>}, {transform_indices = @transform_2, window_bounds = array<i64: 8, 2048>}]} {
    %c0 = arith.constant 0 : index
    %0 = memref.load %arg2[%c0] : memref<1xf32, #tpu.memory_space<smem>>
    %c0_0 = arith.constant 0 : index
    %c0_1 = arith.constant 0 : index
    %1 = vector.load %arg3[%c0_0, %c0_1] : memref<8x2048xf32, #tpu.memory_space<vmem>>, vector<8x2048xf32>
    %2 = vector.broadcast %0 : f32 to vector<8x2048xf32>
    %3 = arith.mulf %2, %1 : vector<8x2048xf32>
    %cst = arith.constant 1.000000e+00 : f32
    %4 = arith.subf %cst, %0 : f32
    %c0_2 = arith.constant 0 : index
    %c0_3 = arith.constant 0 : index
    %5 = vector.load %arg4[%c0_2, %c0_3] : memref<8x2048xf32, #tpu.memory_space<vmem>>, vector<8x2048xf32>
    %6 = vector.broadcast %4 : f32 to vector<8x2048xf32>
    %7 = arith.mulf %6, %5 : vector<8x2048xf32>
    %8 = arith.addf %3, %7 : vector<8x2048xf32>
    %c0_4 = arith.constant 0 : index
    %c0_5 = arith.constant 0 : index
    %9 = vector.load %arg5[%c0_4, %c0_5] : memref<8x2048xf32, #tpu.memory_space<vmem>>, vector<8x2048xf32>
    tpu.vector_store %arg5[%c0_4, %c0_5], %8 {strides = array<i32>} : memref<8x2048xf32, #tpu.memory_space<vmem>>, vector<8x2048xf32>,
    return
  }
  func.func @transform_0(%arg0: i32, %arg1: i32, %arg2: memref<1xf32, #tpu.memory_space<smem>>) -> (i32, i32) {
    %c0_i32 = arith.constant 0 : i32
    return %arg0, %arg1 : i32, i32
  }
  func.func @transform_1(%arg0: i32, %arg1: i32, %arg2: memref<1xf32, #tpu.memory_space<smem>>) -> (i32, i32) {
    %c0_i32 = arith.constant 0 : i32
    return %arg0, %arg1 : i32, i32
  }
  func.func @transform_2(%arg0: i32, %arg1: i32, %arg2: memref<1xf32, #tpu.memory_space<smem>>) -> (i32, i32) {
    %c0_i32 = arith.constant 0 : i32
    return %arg0, %arg1 : i32, i32
  }
}

</mosaic_0001>

<llo_original>
// kernel: tpu_custom_call.1
$region0: #{tpu_custom_call.1}
  #allocation0 [shape = 'u32[]', space=smem, size = 0x4, offset = 0x4, fixed_abs, tag = 'smem constant byte address 0x4 - core index']
  #allocation1 [shape = 'u32[144,128]{1,0:T(1,128)}', space=vmem, size = 0x12000, scoped, tag = 'internal scratch']
  #allocation2 [shape = 's32[1]{0}', space=sflag, size = 0x4, scoped, tag = 'scoped memory for tpu_custom_call.1']
  #allocation3 [shape = 'f32[1]{0:T(128)S(6)}', space=smem, size = 0x200, scoped, tag = 'prefetched SMEM operand 0']
  %s0 = inlined_call_operand.<no memory space> [shape: f32[1], index: 0, kind: input, shape index: {}]
  %s1 = inlined_call_operand.hbm [shape: f32[8,2048], index: 1, kind: input, shape index: {}]
  %s2 = inlined_call_operand.hbm [shape: f32[8,2048], index: 2, kind: input, shape index: {}]
  %s3 = inlined_call_operand.hbm [shape: f32[8,2048], index: 3, kind: output, shape index: {}]
  %s4 = sld [smem:[#allocation0]]
  $region26: #{tpu_custom_call.1} parent=0
    _
  %s6 = ssub.s32 1, %s4
  %s7 = scalar_select 0, %s6, %s4
  %8 = sst [smem:[#allocation3]] %s0
  $region1: #{tpu_custom_call.1} parent=0
    #allocation4 [shape = 'u8[65536]{0}', space=vmem, size = 0x10000, scoped, tag = 'input window, operand 1, single buffered']
    #allocation5 [shape = 's32[1]{0}', space=sflag, size = 0x4, scoped, tag = 'scoped memory for tpu_custom_call.1']
    #allocation6 [shape = 's32[1]{0}', space=sflag, size = 0x4, scoped, tag = 'scoped memory for tpu_custom_call.1']
    #allocation7 [shape = 'u8[65536]{0}', space=vmem, size = 0x10000, scoped, tag = 'input window, operand 2, single buffered']
    #allocation8 [shape = 's32[1]{0}', space=sflag, size = 0x4, scoped, tag = 'scoped memory for tpu_custom_call.1']
    #allocation9 [shape = 'u8[65536]{0}', space=vmem, size = 0x10000, scoped, tag = 'output window, operand 0, single buffered']
    %9 = vsyncpa [#allocation5], 0
    %10 = vsyncpa [#allocation8], 0
    %11 = vsyncpa [#allocation6], 0
    // Predicated region
    $region2: #{tpu_custom_call.1} parent=1 // pred_check
      _
    $region3: #{tpu_custom_call.1} parent=1 // pred_check_branch
      %13 = sbr.rel (0) target = $region5
    $region4: #{tpu_custom_call.1} parent=1 // pred_region
      %s15 = ssub.s32 2048, 2048
      %16 = vsyncadd [#allocation5], %s15
      %s18 = sshll.u32 [#allocation4], 4
      %s19 = int_to_ptr.vmem [resolvable:$true] %s18
      %21 = dma.hbm_to_vmem [thread:$0]  %s1, 2048, %s19, [#allocation5]
    $region5: #{tpu_custom_call.1} parent=1 // pred_fallthru
      _
    // Predicated region
    $region6: #{tpu_custom_call.1} parent=1 // pred_check
      _
    $region7: #{tpu_custom_call.1} parent=1 // pred_check_branch
      %23 = sbr.rel (0) target = $region9
    $region8: #{tpu_custom_call.1} parent=1 // pred_region
      %s25 = ssub.s32 2048, 2048
      %26 = vsyncadd [#allocation8], %s25
      %s28 = sshll.u32 [#allocation7], 4
      %s29 = int_to_ptr.vmem [resolvable:$true] %s28
      %31 = dma.hbm_to_vmem [thread:$0]  %s2, 2048, %s29, [#allocation8]
    $region9: #{tpu_custom_call.1} parent=1 // pred_fallthru
      _
    // Predicated region
    $region10: #{tpu_custom_call.1} parent=1 // pred_check
      _
    $region11: #{tpu_custom_call.1} parent=1 // pred_check_branch
      %33 = sbr.rel (0) target = $region13
    $region12: #{tpu_custom_call.1} parent=1 // pred_region
      %34 = dma.done [#allocation5], 2048
    $region13: #{tpu_custom_call.1} parent=1 // pred_fallthru
      _
    // Predicated region
    $region14: #{tpu_custom_call.1} parent=1 // pred_check
      _
    $region15: #{tpu_custom_call.1} parent=1 // pred_check_branch
      %36 = sbr.rel (0) target = $region17
    $region16: #{tpu_custom_call.1} parent=1 // pred_region
      %37 = dma.done [#allocation8], 2048
    $region17: #{tpu_custom_call.1} parent=1 // pred_fallthru
      _
    %s38 = sld [smem:[#allocation3]]
    %v39 = vld [vmem:[#allocation4] sm:$0xff]
    %v40 = vld [vmem:[#allocation4 + $0x8] sm:$0xff]
    %v41 = vld [vmem:[#allocation4 + $0x10] sm:$0xff]
    %v42 = vld [vmem:[#allocation4 + $0x18] sm:$0xff]
    %v43 = vld [vmem:[#allocation4 + $0x20] sm:$0xff]
    %v44 = vld [vmem:[#allocation4 + $0x28] sm:$0xff]
    %v45 = vld [vmem:[#allocation4 + $0x30] sm:$0xff]
    %v46 = vld [vmem:[#allocation4 + $0x38] sm:$0xff]
    %v47 = vld [vmem:[#allocation4 + $0x40] sm:$0xff]
    %v48 = vld [vmem:[#allocation4 + $0x48] sm:$0xff]
    %v49 = vld [vmem:[#allocation4 + $0x50] sm:$0xff]
    %v50 = vld [vmem:[#allocation4 + $0x58] sm:$0xff]
    %v51 = vld [vmem:[#allocation4 + $0x60] sm:$0xff]
    %v52 = vld [vmem:[#allocation4 + $0x68] sm:$0xff]
    %v53 = vld [vmem:[#allocation4 + $0x70] sm:$0xff]
    %v54 = vld [vmem:[#allocation4 + $0x78] sm:$0xff]
    %v55 = vstv %s38
    %v56 = vmul.f32 %v55, %v39
    %v57 = vmul.f32 %v55, %v40
    %v58 = vmul.f32 %v55, %v41
    %v59 = vmul.f32 %v55, %v42
    %v60 = vmul.f32 %v55, %v43
    %v61 = vmul.f32 %v55, %v44
    %v62 = vmul.f32 %v55, %v45
    %v63 = vmul.f32 %v55, %v46
    %v64 = vmul.f32 %v55, %v47
    %v65 = vmul.f32 %v55, %v48
    %v66 = vmul.f32 %v55, %v49
    %v67 = vmul.f32 %v55, %v50
    %v68 = vmul.f32 %v55, %v51
    %v69 = vmul.f32 %v55, %v52
    %v70 = vmul.f32 %v55, %v53
    %v71 = vmul.f32 %v55, %v54
    %s72 = ssub.f32 1.0, %s38
    %v73 = vld [vmem:[#allocation7] sm:$0xff]
    %v74 = vld [vmem:[#allocation7 + $0x8] sm:$0xff]
    %v75 = vld [vmem:[#allocation7 + $0x10] sm:$0xff]
    %v76 = vld [vmem:[#allocation7 + $0x18] sm:$0xff]
    %v77 = vld [vmem:[#allocation7 + $0x20] sm:$0xff]
    %v78 = vld [vmem:[#allocation7 + $0x28] sm:$0xff]
    %v79 = vld [vmem:[#allocation7 + $0x30] sm:$0xff]
    %v80 = vld [vmem:[#allocation7 + $0x38] sm:$0xff]
    %v81 = vld [vmem:[#allocation7 + $0x40] sm:$0xff]
    %v82 = vld [vmem:[#allocation7 + $0x48] sm:$0xff]
    %v83 = vld [vmem:[#allocation7 + $0x50] sm:$0xff]
    %v84 = vld [vmem:[#allocation7 + $0x58] sm:$0xff]
    %v85 = vld [vmem:[#allocation7 + $0x60] sm:$0xff]
    %v86 = vld [vmem:[#allocation7 + $0x68] sm:$0xff]
    %v87 = vld [vmem:[#allocation7 + $0x70] sm:$0xff]
    %v88 = vld [vmem:[#allocation7 + $0x78] sm:$0xff]
    %v89 = vstv %s72
    %v90 = vmul.f32 %v89, %v73
    %v91 = vmul.f32 %v89, %v74
    %v92 = vmul.f32 %v89, %v75
    %v93 = vmul.f32 %v89, %v76
    %v94 = vmul.f32 %v89, %v77
    %v95 = vmul.f32 %v89, %v78
    %v96 = vmul.f32 %v89, %v79
    %v97 = vmul.f32 %v89, %v80
    %v98 = vmul.f32 %v89, %v81
    %v99 = vmul.f32 %v89, %v82
    %v100 = vmul.f32 %v89, %v83
    %v101 = vmul.f32 %v89, %v84
    %v102 = vmul.f32 %v89, %v85
    %v103 = vmul.f32 %v89, %v86
    %v104 = vmul.f32 %v89, %v87
    %v105 = vmul.f32 %v89, %v88
    %v106 = vadd.f32 %v56, %v90
    %v107 = vadd.f32 %v57, %v91
    %v108 = vadd.f32 %v58, %v92
    %v109 = vadd.f32 %v59, %v93
    %v110 = vadd.f32 %v60, %v94
    %v111 = vadd.f32 %v61, %v95
    %v112 = vadd.f32 %v62, %v96
    %v113 = vadd.f32 %v63, %v97
    %v114 = vadd.f32 %v64, %v98
    %v115 = vadd.f32 %v65, %v99
    %v116 = vadd.f32 %v66, %v100
    %v117 = vadd.f32 %v67, %v101
    %v118 = vadd.f32 %v68, %v102
    %v119 = vadd.f32 %v69, %v103
    %v120 = vadd.f32 %v70, %v104
    %v121 = vadd.f32 %v71, %v105
    %122 = vst [vmem:[#allocation9] sm:$0xff] %v106
    %123 = vst [vmem:[#allocation9 + $0x8] sm:$0xff] %v107
    %124 = vst [vmem:[#allocation9 + $0x10] sm:$0xff] %v108
    %125 = vst [vmem:[#allocation9 + $0x18] sm:$0xff] %v109
    %126 = vst [vmem:[#allocation9 + $0x20] sm:$0xff] %v110
    %127 = vst [vmem:[#allocation9 + $0x28] sm:$0xff] %v111
    %128 = vst [vmem:[#allocation9 + $0x30] sm:$0xff] %v112
    %129 = vst [vmem:[#allocation9 + $0x38] sm:$0xff] %v113
    %130 = vst [vmem:[#allocation9 + $0x40] sm:$0xff] %v114
    %131 = vst [vmem:[#allocation9 + $0x48] sm:$0xff] %v115
    %132 = vst [vmem:[#allocation9 + $0x50] sm:$0xff] %v116
    %133 = vst [vmem:[#allocation9 + $0x58] sm:$0xff] %v117
    %134 = vst [vmem:[#allocation9 + $0x60] sm:$0xff] %v118
    %135 = vst [vmem:[#allocation9 + $0x68] sm:$0xff] %v119
    %136 = vst [vmem:[#allocation9 + $0x70] sm:$0xff] %v120
    %137 = vst [vmem:[#allocation9 + $0x78] sm:$0xff] %v121
    // Predicated region
    $region18: #{tpu_custom_call.1} parent=1 // pred_check
      _
    $region19: #{tpu_custom_call.1} parent=1 // pred_check_branch
      %139 = sbr.rel (0) target = $region21
    $region20: #{tpu_custom_call.1} parent=1 // pred_region
      %s141 = ssub.s32 2048, 2048
      %142 = vsyncadd [#allocation6], %s141
      %s144 = sshll.u32 [#allocation9], 4
      %s145 = int_to_ptr.vmem [resolvable:$true] %s144
      %147 = dma.vmem_to_hbm [thread:$0]  %s145, 2048, %s3, [#allocation6]
    $region21: #{tpu_custom_call.1} parent=1 // pred_fallthru
      _
    // Predicated region
    $region22: #{tpu_custom_call.1} parent=1 // pred_check
      _
    $region23: #{tpu_custom_call.1} parent=1 // pred_check_branch
      %149 = sbr.rel (0) target = $region25
    $region24: #{tpu_custom_call.1} parent=1 // pred_region
      %150 = dma.done [#allocation6], 2048
    $region25: #{tpu_custom_call.1} parent=1 // pred_fallthru
      _
    %151 = vsyncpa [#allocation5], 1
    %152 = vsyncpa [#allocation8], 1
    %153 = vsyncpa [#allocation6], 1

</llo_original>
